<compile_context>
chip_gen: v5e
topology: v5e:2x2
jax: 0.10.0
libtpu: 0.0.40
codegen_flags: <defaults>
</compile_context>

<pallas_src>
import functools

import jax
import jax.numpy as jnp
from jax.experimental import pallas as pl
from jax.experimental.pallas import tpu as pltpu

EPS = 1e-5
NEG_INF = -1e30
LANE = 128


def _round_up(n, m):
    return ((n + m - 1) // m) * m


def _pad_dim(n):
    # v6e/v7x MXU tiles are 256 wide: align big feature dims to 256; keep the
    # minimal 128-lane width for small dims where extra padding is pure waste.
    return _round_up(n, 256 if n >= 256 else LANE)


# ------------------------------- kernel -------------------------------------

def simple_nn_kernel(x_ref, w1_ref, b1_ref, w2_ref, b2_ref, w3_ref, b3_ref, o_ref):
    """Fused 3-layer MLP forward for one batch tile.

    BatchNorm is pre-folded into (w1, b1)/(w2, b2); dropout is identity in
    eval mode.  Matmul operands are cast to the weight storage dtype (bf16 on
    the perf path); accumulation and biases stay f32.
    """
    cdt = w1_ref.dtype

    # layer1 (+BN folded) + ReLU
    h = jnp.dot(x_ref[...].astype(cdt), w1_ref[...],
                preferred_element_type=jnp.float32) + b1_ref[...]
    h = jnp.maximum(h, 0.0)

    # layer2 (+BN folded) + ReLU
    h = jnp.dot(h.astype(cdt), w2_ref[...],
                preferred_element_type=jnp.float32) + b2_ref[...]
    h = jnp.maximum(h, 0.0)

    # layer3 + log_softmax over the lane axis.  Padded logit columns have
    # exactly-zero w3 columns and a -1e30 bias, so they never win the row max
    # and exp() of them underflows to exactly 0.
    logits = jnp.dot(h.astype(cdt), w3_ref[...],
                     preferred_element_type=jnp.float32) + b3_ref[...]
    row_max = jnp.max(logits, axis=-1, keepdims=True)
    z = logits - row_max
    lse = jnp.log(jnp.sum(jnp.exp(z), axis=-1, keepdims=True))
    o_ref[...] = z - lse


# --------------------- one-time parameter preparation -----------------------

def prepare_params(params, compute_dtype=jnp.float32):
    """Hoisted out of the per-call path: fold eval-mode BatchNorm1d into the
    preceding Linear, zero-pad all feature dims to MXU/lane-aligned sizes and
    cast the weight matrices to `compute_dtype` (bf16 recommended on
    v5e/v6e/v7x).  Biases stay f32 (the -1e30 pad-column bias would overflow
    bf16).  Returns a tuple passed straight to simple_nn_forward."""

    def fold(w, b, gamma, beta, mean, var):
        scale = gamma / jnp.sqrt(var + EPS)
        return w * scale, (b - mean) * scale + beta

    w1, b1 = fold(params["w1"], params["b1"], params["gamma1"], params["beta1"],
                  params["mean1"], params["var1"])
    w2, b2 = fold(params["w2"], params["b2"], params["gamma2"], params["beta2"],
                  params["mean2"], params["var2"])
    w3, b3 = params["w3"], params["b3"]

    in_size, hidden = w1.shape
    out_size = w3.shape[1]
    in_p, hid_p, out_p = _pad_dim(in_size), _pad_dim(hidden), _pad_dim(out_size)

    cdt = jnp.dtype(compute_dtype)
    w1_p = jnp.zeros((in_p, hid_p), cdt).at[:in_size, :hidden].set(w1.astype(cdt))
    b1_p = jnp.zeros((1, hid_p), jnp.float32).at[:, :hidden].set(b1)
    w2_p = jnp.zeros((hid_p, hid_p), cdt).at[:hidden, :hidden].set(w2.astype(cdt))
    b2_p = jnp.zeros((1, hid_p), jnp.float32).at[:, :hidden].set(b2)
    w3_p = jnp.zeros((hid_p, out_p), cdt).at[:hidden, :out_size].set(w3.astype(cdt))
    # padded logit columns get a large negative bias -> exp() contributes 0
    b3_p = jnp.full((1, out_p), NEG_INF, jnp.float32).at[:, :out_size].set(b3)

    return w1_p, b1_p, w2_p, b2_p, w3_p, b3_p


# ------------------------------ forward -------------------------------------

@functools.partial(
    jax.jit,
    static_argnames=("out_size", "batch_tile", "single_buffer_weights"))
def simple_nn_forward(x, w1, b1, w2, b2, w3, b3, *, out_size,
                      batch_tile=128, single_buffer_weights=True):
    """x: (B, input_size) float32.  w*/b*: padded params from prepare_params."""
    B, in_size = x.shape
    in_p, hid_p = w1.shape
    out_p = w3.shape[1]

    # Batch tile: sublane-aligned, no larger than the (padded) batch, and
    # giving >=2 grid steps for large batches (v7x has 2 TensorCores).
    bt = max(8, _round_up(batch_tile, 8))
    bt = min(bt, _round_up(B, 8))
    bt = min(bt, max(8, _round_up(pl.cdiv(B, 2), 8)))
    B_p = _round_up(B, bt)

    x_p = jnp.pad(x, ((0, B_p - B), (0, in_p - in_size)))
    grid = (B_p // bt,)

    def param_spec(shape):
        # Whole-array parameter block, identical for every grid step.  Single
        # buffering (double-buffering a constant block only doubles VMEM).
        kwargs = {}
        if single_buffer_weights:
            kwargs["pipeline_mode"] = pl.Buffered(buffer_count=1)
        return pl.BlockSpec(shape, lambda i: (0,) * len(shape), **kwargs)

    in_specs = [
        pl.BlockSpec((bt, in_p), lambda i: (i, 0)),   # x tile (pipelined)
        param_spec((in_p, hid_p)),                    # w1' (BN folded)
        param_spec((1, hid_p)),                       # b1'
        param_spec((hid_p, hid_p)),                   # w2'
        param_spec((1, hid_p)),                       # b2'
        param_spec((hid_p, out_p)),                   # w3
        param_spec((1, out_p)),                       # b3 (pad cols = -1e30)
    ]
    out_specs = pl.BlockSpec((bt, out_p), lambda i: (i, 0))

    # VMEM budget from the actual tiles (weights single-buffered, x/out double
    # buffered) with headroom; keeps moderate hidden sizes inside the scoped
    # limit without exceeding v7x's 64 MiB for this layout.
    param_bytes = sum(a.size * a.dtype.itemsize for a in (w1, b1, w2, b2, w3, b3))
    act_bytes = 2 * (bt * in_p * x_p.dtype.itemsize + bt * out_p * 4)
    vmem_limit = int(min(96 * 2**20,
                         max(32 * 2**20, 2 * (param_bytes + act_bytes))))

    flops = 2 * B_p * (in_p * hid_p + hid_p * hid_p + hid_p * out_p)
    bytes_accessed = int(x_p.size * x_p.dtype.itemsize + param_bytes
                         + B_p * out_p * 4)
    cost = pl.CostEstimate(flops=flops,
                           transcendentals=B_p * (out_p + 1),
                           bytes_accessed=bytes_accessed)

    out_padded = pl.pallas_call(
        simple_nn_kernel,
        out_shape=jax.ShapeDtypeStruct((B_p, out_p), jnp.float32),
        grid=grid,
        in_specs=in_specs,
        out_specs=out_specs,
        compiler_params=pltpu.CompilerParams(
            dimension_semantics=("parallel",),   # batch tiles independent
            vmem_limit_bytes=vmem_limit,
        ),
        cost_estimate=cost,
    )(x_p, w1, b1, w2, b2, w3, b3)

    return out_padded[:B, :out_size]


# --------------------------- init & reference -------------------------------

def init_params(key, input_size, hidden_size, output_size):
    """PyTorch-default init: Linear uniform(+-1/sqrt(fan_in)); BatchNorm1d
    gamma=1, beta=0, running_mean=0, running_var=1."""
    k1, k2, k3, k4, k5, k6 = jax.random.split(key, 6)

    def linear(kw, kb, fan_in, fan_out):
        bound = 1.0 / jnp.sqrt(fan_in)
        # stored transposed vs. torch ((in, out)) so the kernel does x @ w
        w = jax.random.uniform(kw, (fan_in, fan_out), jnp.float32, -bound, bound)
        b = jax.random.uniform(kb, (1, fan_out), jnp.float32, -bound, bound)
        return w, b

    w1, b1 = linear(k1, k2, input_size, hidden_size)
    w2, b2 = linear(k3, k4, hidden_size, hidden_size)
    w3, b3 = linear(k5, k6, hidden_size, output_size)

    ones_h = jnp.ones((1, hidden_size), jnp.float32)
    zeros_h = jnp.zeros((1, hidden_size), jnp.float32)

    return {
        "w1": w1, "b1": b1,
        "gamma1": ones_h, "beta1": zeros_h, "mean1": zeros_h, "var1": ones_h,
        "w2": w2, "b2": b2,
        "gamma2": ones_h, "beta2": zeros_h, "mean2": zeros_h, "var2": ones_h,
        "w3": w3, "b3": b3,
    }


def reference_forward(x, p):
    """Pure-JAX reference matching PyTorch eval-mode forward."""
    h = x @ p["w1"] + p["b1"]
    h = (h - p["mean1"]) * (p["gamma1"] / jnp.sqrt(p["var1"] + EPS)) + p["beta1"]
    h = jnp.maximum(h, 0.0)
    h = h @ p["w2"] + p["b2"]
    h = (h - p["mean2"]) * (p["gamma2"] / jnp.sqrt(p["var2"] + EPS)) + p["beta2"]
    h = jnp.maximum(h, 0.0)
    logits = h @ p["w3"] + p["b3"]
    return jax.nn.log_softmax(logits, axis=1)


# -------------------------------- main ---------------------------------------

if __name__ == "__main__":
    INPUT_SIZE, HIDDEN_SIZE, OUTPUT_SIZE = 32, 32, 16
    BATCH = 8

    key = jax.random.PRNGKey(0)
    kx, kp, kbn = jax.random.split(key, 3)
    x = jax.random.normal(kx, (BATCH, INPUT_SIZE), jnp.float32)
    params = init_params(kp, INPUT_SIZE, HIDDEN_SIZE, OUTPUT_SIZE)

    def forward(x_in, prepped, single_buffer):
        return jax.block_until_ready(
            simple_nn_forward(x_in, *prepped, out_size=OUTPUT_SIZE,
                              single_buffer_weights=single_buffer))

    # --- check 1: f32 compute path, PyTorch-default BN stats ---
    prepped = prepare_params(params, compute_dtype=jnp.float32)
    single_buffer = True
    try:
        out = forward(x, prepped, single_buffer)
    except Exception:
        # TODO(synk): this Pallas build rejected Buffered(1) parameter blocks;
        # fall back to default double-buffered parameter tiles.
        single_buffer = False
        out = forward(x, prepped, single_buffer)

    ref = reference_forward(x, params)
    assert out.shape == (BATCH, OUTPUT_SIZE)
    assert jnp.all(jnp.isfinite(out))
    assert jnp.allclose(out, ref, atol=1e-5, rtol=1e-5)
    assert jnp.allclose(jnp.sum(jnp.exp(out), axis=1), 1.0, atol=1e-5)

    # --- check 2: non-trivial running stats (exercises the BN fold), f32 ---
    kb1, kb2, kb3, kb4 = jax.random.split(kbn, 4)
    params2 = dict(params)
    params2["gamma1"] = 1.0 + 0.1 * jax.random.normal(kb1, (1, HIDDEN_SIZE), jnp.float32)
    params2["beta1"] = 0.1 * jax.random.normal(kb2, (1, HIDDEN_SIZE), jnp.float32)
    params2["mean1"] = 0.1 * jax.random.normal(kb3, (1, HIDDEN_SIZE), jnp.float32)
    params2["var1"] = 1.0 + 0.1 * jax.random.uniform(kb4, (1, HIDDEN_SIZE), jnp.float32)
    prepped2 = prepare_params(params2, compute_dtype=jnp.float32)
    out2 = forward(x, prepped2, single_buffer)
    ref2 = reference_forward(x, params2)
    assert jnp.allclose(out2, ref2, atol=1e-5, rtol=1e-5)

    # --- check 3: bf16 matmul-operand path (recommended on v5e/v6e/v7x) ---
    prepped_bf16 = prepare_params(params, compute_dtype=jnp.bfloat16)
    out3 = forward(x, prepped_bf16, single_buffer)
    assert out3.shape == (BATCH, OUTPUT_SIZE)
    assert jnp.all(jnp.isfinite(out3))
    assert jnp.allclose(out3, ref, atol=5e-2, rtol=5e-2)        # bf16 tolerance
    assert jnp.allclose(jnp.sum(jnp.exp(out3), axis=1), 1.0, atol=1e-4)

    print("KERNEL_OK")
</pallas_src>

<mosaic_0001>
module attributes {stable_mosaic.version = 11 : i64} {
  func.func @simple_nn_kernel(%arg0: i32, %arg1: memref<8x128xf32, #tpu.memory_space<vmem>>, %arg2: memref<128x128xf32, #tpu.memory_space<vmem>>, %arg3: memref<1x128xf32, #tpu.memory_space<vmem>>, %arg4: memref<128x128xf32, #tpu.memory_space<vmem>>, %arg5: memref<1x128xf32, #tpu.memory_space<vmem>>, %arg6: memref<128x128xf32, #tpu.memory_space<vmem>>, %arg7: memref<1x128xf32, #tpu.memory_space<vmem>>, %arg8: memref<8x128xf32, #tpu.memory_space<vmem>>) attributes {dimension_semantics = [#tpu.dimension_semantics<parallel>], iteration_bounds = array<i64: 1>, scalar_prefetch = 0 : i64, scratch_operands = 0 : i64, tpu.core_type = #tpu.core_type<tc>, window_params = [{transform_indices = @transform_0, window_bounds = array<i64: 8, 128>}, {pipeline_mode = #tpu.pipeline_mode<synchronous>, transform_indices = @transform_1, window_bounds = array<i64: 128, 128>}, {pipeline_mode = #tpu.pipeline_mode<synchronous>, transform_indices = @transform_2, window_bounds = array<i64: 1, 128>}, {pipeline_mode = #tpu.pipeline_mode<synchronous>, transform_indices = @transform_3, window_bounds = array<i64: 128, 128>}, {pipeline_mode = #tpu.pipeline_mode<synchronous>, transform_indices = @transform_4, window_bounds = array<i64: 1, 128>}, {pipeline_mode = #tpu.pipeline_mode<synchronous>, transform_indices = @transform_5, window_bounds = array<i64: 128, 128>}, {pipeline_mode = #tpu.pipeline_mode<synchronous>, transform_indices = @transform_6, window_bounds = array<i64: 1, 128>}, {transform_indices = @transform_7, window_bounds = array<i64: 8, 128>}]} {
    %c0 = arith.constant 0 : index
    %c0_0 = arith.constant 0 : index
    %0 = vector.load %arg1[%c0, %c0_0] : memref<8x128xf32, #tpu.memory_space<vmem>>, vector<8x128xf32>
    %c0_1 = arith.constant 0 : index
    %c0_2 = arith.constant 0 : index
    %1 = vector.load %arg2[%c0_1, %c0_2] : memref<128x128xf32, #tpu.memory_space<vmem>>, vector<128x128xf32>
    %cst = arith.constant dense<0.000000e+00> : vector<8x128xf32>
    %2 = tpu.matmul %0, %1, %cst {dimension_numbers = #tpu.dot_dimension_numbers<[1], [0], [0], [1], [0, 0, 1, 1], [], []>} : vector<8x128xf32>, vector<128x128xf32>, vector<8x128xf32> -> vector<8x128xf32>
    %c0_3 = arith.constant 0 : index
    %c0_4 = arith.constant 0 : index
    %3 = vector.load %arg3[%c0_3, %c0_4] : memref<1x128xf32, #tpu.memory_space<vmem>>, vector<1x128xf32>
    %4 = vector.broadcast %3 : vector<1x128xf32> to vector<8x128xf32>
    %5 = arith.addf %2, %4 : vector<8x128xf32>
    %cst_5 = arith.constant 0.000000e+00 : f32
    %6 = vector.broadcast %cst_5 : f32 to vector<8x128xf32>
    %7 = arith.maximumf %5, %6 : vector<8x128xf32>
    %c0_6 = arith.constant 0 : index
    %c0_7 = arith.constant 0 : index
    %8 = vector.load %arg4[%c0_6, %c0_7] : memref<128x128xf32, #tpu.memory_space<vmem>>, vector<128x128xf32>
    %cst_8 = arith.constant dense<0.000000e+00> : vector<8x128xf32>
    %9 = tpu.matmul %7, %8, %cst_8 {dimension_numbers = #tpu.dot_dimension_numbers<[1], [0], [0], [1], [0, 0, 1, 1], [], []>} : vector<8x128xf32>, vector<128x128xf32>, vector<8x128xf32> -> vector<8x128xf32>
    %c0_9 = arith.constant 0 : index
    %c0_10 = arith.constant 0 : index
    %10 = vector.load %arg5[%c0_9, %c0_10] : memref<1x128xf32, #tpu.memory_space<vmem>>, vector<1x128xf32>
    %11 = vector.broadcast %10 : vector<1x128xf32> to vector<8x128xf32>
    %12 = arith.addf %9, %11 : vector<8x128xf32>
    %cst_11 = arith.constant 0.000000e+00 : f32
    %13 = vector.broadcast %cst_11 : f32 to vector<8x128xf32>
    %14 = arith.maximumf %12, %13 : vector<8x128xf32>
    %c0_12 = arith.constant 0 : index
    %c0_13 = arith.constant 0 : index
    %15 = vector.load %arg6[%c0_12, %c0_13] : memref<128x128xf32, #tpu.memory_space<vmem>>, vector<128x128xf32>
    %cst_14 = arith.constant dense<0.000000e+00> : vector<8x128xf32>
    %16 = tpu.matmul %14, %15, %cst_14 {dimension_numbers = #tpu.dot_dimension_numbers<[1], [0], [0], [1], [0, 0, 1, 1], [], []>} : vector<8x128xf32>, vector<128x128xf32>, vector<8x128xf32> -> vector<8x128xf32>
    %c0_15 = arith.constant 0 : index
    %c0_16 = arith.constant 0 : index
    %17 = vector.load %arg7[%c0_15, %c0_16] : memref<1x128xf32, #tpu.memory_space<vmem>>, vector<1x128xf32>
    %18 = vector.broadcast %17 : vector<1x128xf32> to vector<8x128xf32>
    %19 = arith.addf %16, %18 : vector<8x128xf32>
    %cst_17 = arith.constant dense<0xFF800000> : vector<8xf32>
    %20 = vector.multi_reduction <maximumf>, %19, %cst_17 [1] : vector<8x128xf32> to vector<8xf32>
    %21 = vector.shape_cast %20 : vector<8xf32> to vector<8x1xf32>
    %22 = vector.broadcast %21 : vector<8x1xf32> to vector<8x128xf32>
    %23 = arith.subf %19, %22 : vector<8x128xf32>
    %24 = math.exp %23 : vector<8x128xf32>
    %cst_18 = arith.constant dense<0.000000e+00> : vector<8xf32>
    %25 = vector.multi_reduction <add>, %24, %cst_18 [1] : vector<8x128xf32> to vector<8xf32>
    %26 = vector.shape_cast %25 : vector<8xf32> to vector<8x1xf32>
    %27 = math.log %26 : vector<8x1xf32>
    %28 = vector.broadcast %27 : vector<8x1xf32> to vector<8x128xf32>
    %29 = arith.subf %23, %28 : vector<8x128xf32>
    %c0_19 = arith.constant 0 : index
    %c0_20 = arith.constant 0 : index
    %30 = vector.load %arg8[%c0_19, %c0_20] : memref<8x128xf32, #tpu.memory_space<vmem>>, vector<8x128xf32>
    tpu.vector_store %arg8[%c0_19, %c0_20], %29 {strides = array<i32>} : memref<8x128xf32, #tpu.memory_space<vmem>>, vector<8x128xf32>,
    return
  }
  func.func @transform_0(%arg0: i32) -> (i32, i32) {
    %c0_i32 = arith.constant 0 : i32
    %c0_i32_0 = arith.constant 0 : i32
    return %arg0, %c0_i32 : i32, i32
  }
  func.func @transform_1(%arg0: i32) -> (i32, i32) {
    %c0_i32 = arith.constant 0 : i32
    %c0_i32_0 = arith.constant 0 : i32
    %c0_i32_1 = arith.constant 0 : i32
    return %c0_i32, %c0_i32_0 : i32, i32
  }
  func.func @transform_2(%arg0: i32) -> (i32, i32) {
    %c0_i32 = arith.constant 0 : i32
    %c0_i32_0 = arith.constant 0 : i32
    %c0_i32_1 = arith.constant 0 : i32
    return %c0_i32, %c0_i32_0 : i32, i32
  }
  func.func @transform_3(%arg0: i32) -> (i32, i32) {
    %c0_i32 = arith.constant 0 : i32
    %c0_i32_0 = arith.constant 0 : i32
    %c0_i32_1 = arith.constant 0 : i32
    return %c0_i32, %c0_i32_0 : i32, i32
  }
  func.func @transform_4(%arg0: i32) -> (i32, i32) {
    %c0_i32 = arith.constant 0 : i32
    %c0_i32_0 = arith.constant 0 : i32
    %c0_i32_1 = arith.constant 0 : i32
    return %c0_i32, %c0_i32_0 : i32, i32
  }
  func.func @transform_5(%arg0: i32) -> (i32, i32) {
    %c0_i32 = arith.constant 0 : i32
    %c0_i32_0 = arith.constant 0 : i32
    %c0_i32_1 = arith.constant 0 : i32
    return %c0_i32, %c0_i32_0 : i32, i32
  }
  func.func @transform_6(%arg0: i32) -> (i32, i32) {
    %c0_i32 = arith.constant 0 : i32
    %c0_i32_0 = arith.constant 0 : i32
    %c0_i32_1 = arith.constant 0 : i32
    return %c0_i32, %c0_i32_0 : i32, i32
  }
  func.func @transform_7(%arg0: i32) -> (i32, i32) {
    %c0_i32 = arith.constant 0 : i32
    %c0_i32_0 = arith.constant 0 : i32
    return %arg0, %c0_i32 : i32, i32
  }
}

module attributes {stable_mosaic.version = 11 : i64} {
  func.func @simple_nn_kernel(%arg0: i32, %arg1: memref<8x128xf32, #tpu.memory_space<vmem>>, %arg2: memref<128x128xf32, #tpu.memory_space<vmem>>, %arg3: memref<1x128xf32, #tpu.memory_space<vmem>>, %arg4: memref<128x128xf32, #tpu.memory_space<vmem>>, %arg5: memref<1x128xf32, #tpu.memory_space<vmem>>, %arg6: memref<128x128xf32, #tpu.memory_space<vmem>>, %arg7: memref<1x128xf32, #tpu.memory_space<vmem>>, %arg8: memref<8x128xf32, #tpu.memory_space<vmem>>) attributes {dimension_semantics = [#tpu.dimension_semantics<parallel>], iteration_bounds = array<i64: 1>, scalar_prefetch = 0 : i64, scratch_operands = 0 : i64, tpu.core_type = #tpu.core_type<tc>, window_params = [{transform_indices = @transform_0, window_bounds = array<i64: 8, 128>}, {pipeline_mode = #tpu.pipeline_mode<synchronous>, transform_indices = @transform_1, window_bounds = array<i64: 128, 128>}, {pipeline_mode = #tpu.pipeline_mode<synchronous>, transform_indices = @transform_2, window_bounds = array<i64: 1, 128>}, {pipeline_mode = #tpu.pipeline_mode<synchronous>, transform_indices = @transform_3, window_bounds = array<i64: 128, 128>}, {pipeline_mode = #tpu.pipeline_mode<synchronous>, transform_indices = @transform_4, window_bounds = array<i64: 1, 128>}, {pipeline_mode = #tpu.pipeline_mode<synchronous>, transform_indices = @transform_5, window_bounds = array<i64: 128, 128>}, {pipeline_mode = #tpu.pipeline_mode<synchronous>, transform_indices = @transform_6, window_bounds = array<i64: 1, 128>}, {transform_indices = @transform_7, window_bounds = array<i64: 8, 128>}]} {
    %c0 = arith.constant 0 : index
    %c0_0 = arith.constant 0 : index
    %0 = vector.load %arg1[%c0, %c0_0] : memref<8x128xf32, #tpu.memory_space<vmem>>, vector<8x128xf32>
    %c0_1 = arith.constant 0 : index
    %c0_2 = arith.constant 0 : index
    %1 = vector.load %arg2[%c0_1, %c0_2] : memref<128x128xf32, #tpu.memory_space<vmem>>, vector<128x128xf32>
    %cst = arith.constant dense<0.000000e+00> : vector<8x128xf32>
    %2 = tpu.matmul %0, %1, %cst {dimension_numbers = #tpu.dot_dimension_numbers<[1], [0], [0], [1], [0, 0, 1, 1], [], []>} : vector<8x128xf32>, vector<128x128xf32>, vector<8x128xf32> -> vector<8x128xf32>
    %c0_3 = arith.constant 0 : index
    %c0_4 = arith.constant 0 : index
    %3 = vector.load %arg3[%c0_3, %c0_4] : memref<1x128xf32, #tpu.memory_space<vmem>>, vector<1x128xf32>
    %4 = vector.broadcast %3 : vector<1x128xf32> to vector<8x128xf32>
    %5 = arith.addf %2, %4 : vector<8x128xf32>
    %cst_5 = arith.constant 0.000000e+00 : f32
    %6 = vector.broadcast %cst_5 : f32 to vector<8x128xf32>
    %7 = arith.maximumf %5, %6 : vector<8x128xf32>
    %c0_6 = arith.constant 0 : index
    %c0_7 = arith.constant 0 : index
    %8 = vector.load %arg4[%c0_6, %c0_7] : memref<128x128xf32, #tpu.memory_space<vmem>>, vector<128x128xf32>
    %cst_8 = arith.constant dense<0.000000e+00> : vector<8x128xf32>
    %9 = tpu.matmul %7, %8, %cst_8 {dimension_numbers = #tpu.dot_dimension_numbers<[1], [0], [0], [1], [0, 0, 1, 1], [], []>} : vector<8x128xf32>, vector<128x128xf32>, vector<8x128xf32> -> vector<8x128xf32>
    %c0_9 = arith.constant 0 : index
    %c0_10 = arith.constant 0 : index
    %10 = vector.load %arg5[%c0_9, %c0_10] : memref<1x128xf32, #tpu.memory_space<vmem>>, vector<1x128xf32>
    %11 = vector.broadcast %10 : vector<1x128xf32> to vector<8x128xf32>
    %12 = arith.addf %9, %11 : vector<8x128xf32>
    %cst_11 = arith.constant 0.000000e+00 : f32
    %13 = vector.broadcast %cst_11 : f32 to vector<8x128xf32>
    %14 = arith.maximumf %12, %13 : vector<8x128xf32>
    %c0_12 = arith.constant 0 : index
    %c0_13 = arith.constant 0 : index
    %15 = vector.load %arg6[%c0_12, %c0_13] : memref<128x128xf32, #tpu.memory_space<vmem>>, vector<128x128xf32>
    %cst_14 = arith.constant dense<0.000000e+00> : vector<8x128xf32>
    %16 = tpu.matmul %14, %15, %cst_14 {dimension_numbers = #tpu.dot_dimension_numbers<[1], [0], [0], [1], [0, 0, 1, 1], [], []>} : vector<8x128xf32>, vector<128x128xf32>, vector<8x128xf32> -> vector<8x128xf32>
    %c0_15 = arith.constant 0 : index
    %c0_16 = arith.constant 0 : index
    %17 = vector.load %arg7[%c0_15, %c0_16] : memref<1x128xf32, #tpu.memory_space<vmem>>, vector<1x128xf32>
    %18 = vector.broadcast %17 : vector<1x128xf32> to vector<8x128xf32>
    %19 = arith.addf %16, %18 : vector<8x128xf32>
    %cst_17 = arith.constant dense<0xFF800000> : vector<8xf32>
    %20 = vector.multi_reduction <maximumf>, %19, %cst_17 [1] : vector<8x128xf32> to vector<8xf32>
    %21 = vector.shape_cast %20 : vector<8xf32> to vector<8x1xf32>
    %22 = vector.broadcast %21 : vector<8x1xf32> to vector<8x128xf32>
    %23 = arith.subf %19, %22 : vector<8x128xf32>
    %24 = math.exp %23 : vector<8x128xf32>
    %cst_18 = arith.constant dense<0.000000e+00> : vector<8xf32>
    %25 = vector.multi_reduction <add>, %24, %cst_18 [1] : vector<8x128xf32> to vector<8xf32>
    %26 = vector.shape_cast %25 : vector<8xf32> to vector<8x1xf32>
    %27 = math.log %26 : vector<8x1xf32>
    %28 = vector.broadcast %27 : vector<8x1xf32> to vector<8x128xf32>
    %29 = arith.subf %23, %28 : vector<8x128xf32>
    %c0_19 = arith.constant 0 : index
    %c0_20 = arith.constant 0 : index
    %30 = vector.load %arg8[%c0_19, %c0_20] : memref<8x128xf32, #tpu.memory_space<vmem>>, vector<8x128xf32>
    tpu.vector_store %arg8[%c0_19, %c0_20], %29 {strides = array<i32>} : memref<8x128xf32, #tpu.memory_space<vmem>>, vector<8x128xf32>,
    return
  }
  func.func @transform_0(%arg0: i32) -> (i32, i32) {
    %c0_i32 = arith.constant 0 : i32
    %c0_i32_0 = arith.constant 0 : i32
    return %arg0, %c0_i32 : i32, i32
  }
  func.func @transform_1(%arg0: i32) -> (i32, i32) {
    %c0_i32 = arith.constant 0 : i32
    %c0_i32_0 = arith.constant 0 : i32
    %c0_i32_1 = arith.constant 0 : i32
    return %c0_i32, %c0_i32_0 : i32, i32
  }
  func.func @transform_2(%arg0: i32) -> (i32, i32) {
    %c0_i32 = arith.constant 0 : i32
    %c0_i32_0 = arith.constant 0 : i32
    %c0_i32_1 = arith.constant 0 : i32
    return %c0_i32, %c0_i32_0 : i32, i32
  }
  func.func @transform_3(%arg0: i32) -> (i32, i32) {
    %c0_i32 = arith.constant 0 : i32
    %c0_i32_0 = arith.constant 0 : i32
    %c0_i32_1 = arith.constant 0 : i32
    return %c0_i32, %c0_i32_0 : i32, i32
  }
  func.func @transform_4(%arg0: i32) -> (i32, i32) {
    %c0_i32 = arith.constant 0 : i32
    %c0_i32_0 = arith.constant 0 : i32
    %c0_i32_1 = arith.constant 0 : i32
    return %c0_i32, %c0_i32_0 : i32, i32
  }
  func.func @transform_5(%arg0: i32) -> (i32, i32) {
    %c0_i32 = arith.constant 0 : i32
    %c0_i32_0 = arith.constant 0 : i32
    %c0_i32_1 = arith.constant 0 : i32
    return %c0_i32, %c0_i32_0 : i32, i32
  }
  func.func @transform_6(%arg0: i32) -> (i32, i32) {
    %c0_i32 = arith.constant 0 : i32
    %c0_i32_0 = arith.constant 0 : i32
    %c0_i32_1 = arith.constant 0 : i32
    return %c0_i32, %c0_i32_0 : i32, i32
  }
  func.func @transform_7(%arg0: i32) -> (i32, i32) {
    %c0_i32 = arith.constant 0 : i32
    %c0_i32_0 = arith.constant 0 : i32
    return %arg0, %c0_i32 : i32, i32
  }
}

</mosaic_0001>

<llo_original>
// kernel: simple_nn_forward.1
$region0: #{simple_nn_forward.1}
  #allocation0 [shape = 'u32[]', space=smem, size = 0x4, offset = 0x4, fixed_abs, tag = 'smem constant byte address 0x4 - core index']
  #allocation1 [shape = 'u32[72,128]{1,0:T(1,128)}', space=vmem, size = 0x9000, scoped, tag = 'internal scratch']
  %s0 = inlined_call_operand.vmem [shape: f32[8,128], index: 0, kind: input, shape index: {}]
  %s1 = inlined_call_operand.hbm [shape: f32[128,128], index: 1, kind: input, shape index: {}]
  %s2 = inlined_call_operand.vmem [shape: f32[1,128], index: 2, kind: input, shape index: {}]
  %s3 = inlined_call_operand.hbm [shape: f32[128,128], index: 3, kind: input, shape index: {}]
  %s4 = inlined_call_operand.vmem [shape: f32[1,128], index: 4, kind: input, shape index: {}]
  %s5 = inlined_call_operand.hbm [shape: f32[128,128], index: 5, kind: input, shape index: {}]
  %s6 = inlined_call_operand.vmem [shape: f32[1,128], index: 6, kind: input, shape index: {}]
  %s7 = inlined_call_operand.hbm [shape: f32[8,128], index: 7, kind: output, shape index: {}]
  %s8 = sld [smem:[#allocation0]]
  $region50: #{simple_nn_forward.1} parent=0
    _
  %s10 = ssub.s32 1, %s8
  %s11 = scalar_select 0, %s10, %s8
  $region1: #{simple_nn_forward.1} parent=0
    #allocation2 [shape = 'u8[65536]{0}', space=vmem, size = 0x10000, scoped, tag = 'input window, operand 1, single buffered']
    #allocation3 [shape = 's32[1]{0}', space=sflag, size = 0x4, scoped, tag = 'scoped memory for simple_nn_forward.1']
    #allocation4 [shape = 's32[1]{0}', space=sflag, size = 0x4, scoped, tag = 'scoped memory for simple_nn_forward.1']
    #allocation5 [shape = 'u8[65536]{0}', space=vmem, size = 0x10000, scoped, tag = 'input window, operand 3, single buffered']
    #allocation6 [shape = 's32[1]{0}', space=sflag, size = 0x4, scoped, tag = 'scoped memory for simple_nn_forward.1']
    #allocation7 [shape = 'u8[65536]{0}', space=vmem, size = 0x10000, scoped, tag = 'input window, operand 5, single buffered']
    #allocation8 [shape = 'u8[4096]{0}', space=vmem, size = 0x1000, scoped, tag = 'output window, operand 0, single buffered']
    %12 = vsyncpa [#allocation3], 0
    %13 = vsyncpa [#allocation6], 0
    %14 = vsyncpa [#allocation4], 0
    // Predicated region
    $region2: #{simple_nn_forward.1} parent=1 // pred_check
      _
    $region3: #{simple_nn_forward.1} parent=1 // pred_check_branch
      %16 = sbr.rel (0) target = $region5
    $region4: #{simple_nn_forward.1} parent=1 // pred_region
      _
    $region5: #{simple_nn_forward.1} parent=1 // pred_fallthru
      _
    // Predicated region
    $region6: #{simple_nn_forward.1} parent=1 // pred_check
      _
    $region7: #{simple_nn_forward.1} parent=1 // pred_check_branch
      %18 = sbr.rel (0) target = $region9
    $region8: #{simple_nn_forward.1} parent=1 // pred_region
      %20 = vsyncadd [#allocation3], 0
      %s21 = sshll.u32 %s1, 4
      %s22 = int_to_ptr.hbm [resolvable:$true] %s21
      %s23 = sshll.u32 [#allocation2], 4
      %s24 = int_to_ptr.vmem [resolvable:$true] %s23
      %29 = dma.hbm_to_vmem [thread:$0]  %s22, 2048, %s24, [#allocation3], 128, 128, 8
    $region9: #{simple_nn_forward.1} parent=1 // pred_fallthru
      _
    // Predicated region
    $region10: #{simple_nn_forward.1} parent=1 // pred_check
      _
    $region11: #{simple_nn_forward.1} parent=1 // pred_check_branch
      %31 = sbr.rel (0) target = $region13
    $region12: #{simple_nn_forward.1} parent=1 // pred_region
      _
    $region13: #{simple_nn_forward.1} parent=1 // pred_fallthru
      _
    // Predicated region
    $region14: #{simple_nn_forward.1} parent=1 // pred_check
      _
    $region15: #{simple_nn_forward.1} parent=1 // pred_check_branch
      %33 = sbr.rel (0) target = $region17
    $region16: #{simple_nn_forward.1} parent=1 // pred_region
      %35 = vsyncadd [#allocation6], 0
      %s36 = sshll.u32 %s3, 4
      %s37 = int_to_ptr.hbm [resolvable:$true] %s36
      %s38 = sshll.u32 [#allocation5], 4
      %s39 = int_to_ptr.vmem [resolvable:$true] %s38
      %44 = dma.hbm_to_vmem [thread:$0]  %s37, 2048, %s39, [#allocation6], 128, 128, 8
    $region17: #{simple_nn_forward.1} parent=1 // pred_fallthru
      _
    // Predicated region
    $region18: #{simple_nn_forward.1} parent=1 // pred_check
      _
    $region19: #{simple_nn_forward.1} parent=1 // pred_check_branch
      %46 = sbr.rel (0) target = $region21
    $region20: #{simple_nn_forward.1} parent=1 // pred_region
      _
    $region21: #{simple_nn_forward.1} parent=1 // pred_fallthru
      _
    // Predicated region
    $region22: #{simple_nn_forward.1} parent=1 // pred_check
      _
    $region23: #{simple_nn_forward.1} parent=1 // pred_check_branch
      %48 = sbr.rel (0) target = $region25
    $region24: #{simple_nn_forward.1} parent=1 // pred_region
      %50 = vsyncadd [#allocation6], 0
      %s51 = sshll.u32 %s5, 4
      %s52 = int_to_ptr.hbm [resolvable:$true] %s51
      %s53 = sshll.u32 [#allocation7], 4
      %s54 = int_to_ptr.vmem [resolvable:$true] %s53
      %59 = dma.hbm_to_vmem [thread:$0]  %s52, 2048, %s54, [#allocation6], 128, 128, 8
    $region25: #{simple_nn_forward.1} parent=1 // pred_fallthru
      _
    // Predicated region
    $region26: #{simple_nn_forward.1} parent=1 // pred_check
      _
    $region27: #{simple_nn_forward.1} parent=1 // pred_check_branch
      %61 = sbr.rel (0) target = $region29
    $region28: #{simple_nn_forward.1} parent=1 // pred_region
      _
    $region29: #{simple_nn_forward.1} parent=1 // pred_fallthru
      _
    // Predicated region
    $region30: #{simple_nn_forward.1} parent=1 // pred_check
      _
    $region31: #{simple_nn_forward.1} parent=1 // pred_check_branch
      %63 = sbr.rel (0) target = $region33
    $region32: #{simple_nn_forward.1} parent=1 // pred_region
      %65 = dma.done [#allocation3], 2048
    $region33: #{simple_nn_forward.1} parent=1 // pred_fallthru
      _
    // Predicated region
    $region34: #{simple_nn_forward.1} parent=1 // pred_check
      _
    $region35: #{simple_nn_forward.1} parent=1 // pred_check_branch
      %67 = sbr.rel (0) target = $region37
    $region36: #{simple_nn_forward.1} parent=1 // pred_region
      %69 = dma.done [#allocation6], 2048
    $region37: #{simple_nn_forward.1} parent=1 // pred_fallthru
      _
    // Predicated region
    $region38: #{simple_nn_forward.1} parent=1 // pred_check
      _
    $region39: #{simple_nn_forward.1} parent=1 // pred_check_branch
      %71 = sbr.rel (0) target = $region41
    $region40: #{simple_nn_forward.1} parent=1 // pred_region
      %73 = dma.done [#allocation6], 2048
    $region41: #{simple_nn_forward.1} parent=1 // pred_fallthru
      _
    %v74 = vld [vmem:[%s0] sm:$0xff]
    %v75 = vld [vmem:[#allocation2] sm:$0xff]
    %v76 = vld [vmem:[#allocation2 + $0x8] sm:$0xff]
    %v77 = vld [vmem:[#allocation2 + $0x10] sm:$0xff]
    %v78 = vld [vmem:[#allocation2 + $0x18] sm:$0xff]
    %v79 = vld [vmem:[#allocation2 + $0x20] sm:$0xff]
    %v80 = vld [vmem:[#allocation2 + $0x28] sm:$0xff]
    %v81 = vld [vmem:[#allocation2 + $0x30] sm:$0xff]
    %v82 = vld [vmem:[#allocation2 + $0x38] sm:$0xff]
    %v83 = vld [vmem:[#allocation2 + $0x40] sm:$0xff]
    %v84 = vld [vmem:[#allocation2 + $0x48] sm:$0xff]
    %v85 = vld [vmem:[#allocation2 + $0x50] sm:$0xff]
    %v86 = vld [vmem:[#allocation2 + $0x58] sm:$0xff]
    %v87 = vld [vmem:[#allocation2 + $0x60] sm:$0xff]
    %v88 = vld [vmem:[#allocation2 + $0x68] sm:$0xff]
    %v89 = vld [vmem:[#allocation2 + $0x70] sm:$0xff]
    %v90 = vld [vmem:[#allocation2 + $0x78] sm:$0xff]
    %v91 = vld [vmem:[%s2] sm:$0x1]
    %v93 = vperm.slane %v91, 0
    %95 = vmatpush.msra.mxu0 %v90
    %96 = vmatpush.msra.mxu0 %v89
    %97 = vmatpush.msra.mxu0 %v88
    %98 = vmatpush.msra.mxu0 %v87
    %99 = vmatpush.msra.mxu0 %v86
    %100 = vmatpush.msra.mxu0 %v85
    %101 = vmatpush.msra.mxu0 %v84
    %102 = vmatpush.msra.mxu0 %v83
    %103 = vmatpush.msra.mxu0 %v82
    %104 = vmatpush.msra.mxu0 %v81
    %105 = vmatpush.msra.mxu0 %v80
    %106 = vmatpush.msra.mxu0 %v79
    %107 = vmatpush.msra.mxu0 %v78
    %108 = vmatpush.msra.mxu0 %v77
    %109 = vmatpush.msra.mxu0 %v76
    %110 = vmatpush.msra.mxu0 %v75
    %111 = vmatmul.f32.gmra.mxu0 %v74
    %v112 = vpop.f32.mrf.mxu0
    %v113 = vadd.f32 %v93, %v112
    %114 = vdwg.mxu0
    %v115 = vmax.f32 %v113, 0.0
    %v116 = vld [vmem:[#allocation5] sm:$0xff]
    %v117 = vld [vmem:[#allocation5 + $0x8] sm:$0xff]
    %v118 = vld [vmem:[#allocation5 + $0x10] sm:$0xff]
    %v119 = vld [vmem:[#allocation5 + $0x18] sm:$0xff]
    %v120 = vld [vmem:[#allocation5 + $0x20] sm:$0xff]
    %v121 = vld [vmem:[#allocation5 + $0x28] sm:$0xff]
    %v122 = vld [vmem:[#allocation5 + $0x30] sm:$0xff]
    %v123 = vld [vmem:[#allocation5 + $0x38] sm:$0xff]
    %v124 = vld [vmem:[#allocation5 + $0x40] sm:$0xff]
    %v125 = vld [vmem:[#allocation5 + $0x48] sm:$0xff]
    %v126 = vld [vmem:[#allocation5 + $0x50] sm:$0xff]
    %v127 = vld [vmem:[#allocation5 + $0x58] sm:$0xff]
    %v128 = vld [vmem:[#allocation5 + $0x60] sm:$0xff]
    %v129 = vld [vmem:[#allocation5 + $0x68] sm:$0xff]
    %v130 = vld [vmem:[#allocation5 + $0x70] sm:$0xff]
    %v131 = vld [vmem:[#allocation5 + $0x78] sm:$0xff]
    %v132 = vld [vmem:[%s4] sm:$0x1]
    %v134 = vperm.slane %v132, 0
    %136 = vmatpush.msra.mxu0 %v131
    %137 = vmatpush.msra.mxu0 %v130
    %138 = vmatpush.msra.mxu0 %v129
    %139 = vmatpush.msra.mxu0 %v128
    %140 = vmatpush.msra.mxu0 %v127
    %141 = vmatpush.msra.mxu0 %v126
    %142 = vmatpush.msra.mxu0 %v125
    %143 = vmatpush.msra.mxu0 %v124
    %144 = vmatpush.msra.mxu0 %v123
    %145 = vmatpush.msra.mxu0 %v122
    %146 = vmatpush.msra.mxu0 %v121
    %147 = vmatpush.msra.mxu0 %v120
    %148 = vmatpush.msra.mxu0 %v119
    %149 = vmatpush.msra.mxu0 %v118
    %150 = vmatpush.msra.mxu0 %v117
    %151 = vmatpush.msra.mxu0 %v116
    %152 = vmatmul.f32.gmra.mxu0 %v115
    %v153 = vpop.f32.mrf.mxu0
    %v154 = vadd.f32 %v134, %v153
    %155 = vdwg.mxu0
    %v156 = vmax.f32 %v154, 0.0
    %v157 = vld [vmem:[#allocation7] sm:$0xff]
    %v158 = vld [vmem:[#allocation7 + $0x8] sm:$0xff]
    %v159 = vld [vmem:[#allocation7 + $0x10] sm:$0xff]
    %v160 = vld [vmem:[#allocation7 + $0x18] sm:$0xff]
    %v161 = vld [vmem:[#allocation7 + $0x20] sm:$0xff]
    %v162 = vld [vmem:[#allocation7 + $0x28] sm:$0xff]
    %v163 = vld [vmem:[#allocation7 + $0x30] sm:$0xff]
    %v164 = vld [vmem:[#allocation7 + $0x38] sm:$0xff]
    %v165 = vld [vmem:[#allocation7 + $0x40] sm:$0xff]
    %v166 = vld [vmem:[#allocation7 + $0x48] sm:$0xff]
    %v167 = vld [vmem:[#allocation7 + $0x50] sm:$0xff]
    %v168 = vld [vmem:[#allocation7 + $0x58] sm:$0xff]
    %v169 = vld [vmem:[#allocation7 + $0x60] sm:$0xff]
    %v170 = vld [vmem:[#allocation7 + $0x68] sm:$0xff]
    %v171 = vld [vmem:[#allocation7 + $0x70] sm:$0xff]
    %v172 = vld [vmem:[#allocation7 + $0x78] sm:$0xff]
    %v173 = vld [vmem:[%s6] sm:$0x1]
    %v175 = vperm.slane %v173, 0
    %177 = vmatpush.msra.mxu0 %v172
    %178 = vmatpush.msra.mxu0 %v171
    %179 = vmatpush.msra.mxu0 %v170
    %180 = vmatpush.msra.mxu0 %v169
    %181 = vmatpush.msra.mxu0 %v168
    %182 = vmatpush.msra.mxu0 %v167
    %183 = vmatpush.msra.mxu0 %v166
    %184 = vmatpush.msra.mxu0 %v165
    %185 = vmatpush.msra.mxu0 %v164
    %186 = vmatpush.msra.mxu0 %v163
    %187 = vmatpush.msra.mxu0 %v162
    %188 = vmatpush.msra.mxu0 %v161
    %189 = vmatpush.msra.mxu0 %v160
    %190 = vmatpush.msra.mxu0 %v159
    %191 = vmatpush.msra.mxu0 %v158
    %192 = vmatpush.msra.mxu0 %v157
    %193 = vmatmul.f32.gmra.mxu0 %v156
    %v194 = vpop.f32.mrf.mxu0
    %v195 = vadd.f32 %v175, %v194
    %196 = vdwg.mxu0
    %197 = vmax.xlane.f32.xlu0 %v195
    %v198 = vpop.xlane.xlu0 %197
    %v199 = vsub.f32 %v195, %v198
    %v200 = vmul.f32 %v199, 1.442695
    %v201 = vpow.pop %v200
    %202 = vadd.xlane.f32.xlu0 %v201
    %v203 = vpop.xlane.xlu0 %202
    %v204 = vlog2.pop %v203
    %v205 = vmul.f32 %v204, 0.6931472
    %v206 = vsub.f32 %v199, %v205
    %207 = vst [vmem:[#allocation8] sm:$0xff] %v206
    // Predicated region
    $region42: #{simple_nn_forward.1} parent=1 // pred_check
      _
    $region43: #{simple_nn_forward.1} parent=1 // pred_check_branch
      %209 = sbr.rel (0) target = $region45
    $region44: #{simple_nn_forward.1} parent=1 // pred_region
      %211 = vsyncadd [#allocation4], 0
      %s213 = sshll.u32 [#allocation8], 4
      %s214 = int_to_ptr.vmem [resolvable:$true] %s213
      %s215 = sshll.u32 %s7, 4
      %s216 = int_to_ptr.hbm [resolvable:$true] %s215
      %218 = dma.vmem_to_hbm [thread:$0]  %s214, 128, %s216, [#allocation4]
    $region45: #{simple_nn_forward.1} parent=1 // pred_fallthru
      _
    // Predicated region
    $region46: #{simple_nn_forward.1} parent=1 // pred_check
      _
    $region47: #{simple_nn_forward.1} parent=1 // pred_check_branch
      %220 = sbr.rel (0) target = $region49
    $region48: #{simple_nn_forward.1} parent=1 // pred_region
      %222 = dma.done [#allocation4], 128
    $region49: #{simple_nn_forward.1} parent=1 // pred_fallthru
      _
    %223 = vsyncpa [#allocation3], 1
    %224 = vsyncpa [#allocation6], 1
    %225 = vsyncpa [#allocation4], 1

// kernel: simple_nn_forward.1
$region0: #{simple_nn_forward.1}
  #allocation0 [shape = 'u32[]', space=smem, size = 0x4, offset = 0x4, fixed_abs, tag = 'smem constant byte address 0x4 - core index']
  #allocation1 [shape = 'u32[72,128]{1,0:T(1,128)}', space=vmem, size = 0x9000, scoped, tag = 'internal scratch']
  %s0 = inlined_call_operand.vmem [shape: f32[8,128], index: 0, kind: input, shape index: {}]
  %s1 = inlined_call_operand.hbm [shape: f32[128,128], index: 1, kind: input, shape index: {}]
  %s2 = inlined_call_operand.vmem [shape: f32[1,128], index: 2, kind: input, shape index: {}]
  %s3 = inlined_call_operand.hbm [shape: f32[128,128], index: 3, kind: input, shape index: {}]
  %s4 = inlined_call_operand.vmem [shape: f32[1,128], index: 4, kind: input, shape index: {}]
  %s5 = inlined_call_operand.hbm [shape: f32[128,128], index: 5, kind: input, shape index: {}]
  %s6 = inlined_call_operand.vmem [shape: f32[1,128], index: 6, kind: input, shape index: {}]
  %s7 = inlined_call_operand.hbm [shape: f32[8,128], index: 7, kind: output, shape index: {}]
  %s8 = sld [smem:[#allocation0]]
  $region50: #{simple_nn_forward.1} parent=0
    _
  %s10 = ssub.s32 1, %s8
  %s11 = scalar_select 0, %s10, %s8
  $region1: #{simple_nn_forward.1} parent=0
    #allocation2 [shape = 'u8[65536]{0}', space=vmem, size = 0x10000, scoped, tag = 'input window, operand 1, single buffered']
    #allocation3 [shape = 's32[1]{0}', space=sflag, size = 0x4, scoped, tag = 'scoped memory for simple_nn_forward.1']
    #allocation4 [shape = 's32[1]{0}', space=sflag, size = 0x4, scoped, tag = 'scoped memory for simple_nn_forward.1']
    #allocation5 [shape = 'u8[65536]{0}', space=vmem, size = 0x10000, scoped, tag = 'input window, operand 3, single buffered']
    #allocation6 [shape = 's32[1]{0}', space=sflag, size = 0x4, scoped, tag = 'scoped memory for simple_nn_forward.1']
    #allocation7 [shape = 'u8[65536]{0}', space=vmem, size = 0x10000, scoped, tag = 'input window, operand 5, single buffered']
    #allocation8 [shape = 'u8[4096]{0}', space=vmem, size = 0x1000, scoped, tag = 'output window, operand 0, single buffered']
    %12 = vsyncpa [#allocation3], 0
    %13 = vsyncpa [#allocation6], 0
    %14 = vsyncpa [#allocation4], 0
    // Predicated region
    $region2: #{simple_nn_forward.1} parent=1 // pred_check
      _
    $region3: #{simple_nn_forward.1} parent=1 // pred_check_branch
      %16 = sbr.rel (0) target = $region5
    $region4: #{simple_nn_forward.1} parent=1 // pred_region
      _
    $region5: #{simple_nn_forward.1} parent=1 // pred_fallthru
      _
    // Predicated region
    $region6: #{simple_nn_forward.1} parent=1 // pred_check
      _
    $region7: #{simple_nn_forward.1} parent=1 // pred_check_branch
      %18 = sbr.rel (0) target = $region9
    $region8: #{simple_nn_forward.1} parent=1 // pred_region
      %20 = vsyncadd [#allocation3], 0
      %s21 = sshll.u32 %s1, 4
      %s22 = int_to_ptr.hbm [resolvable:$true] %s21
      %s23 = sshll.u32 [#allocation2], 4
      %s24 = int_to_ptr.vmem [resolvable:$true] %s23
      %29 = dma.hbm_to_vmem [thread:$0]  %s22, 2048, %s24, [#allocation3], 128, 128, 8
    $region9: #{simple_nn_forward.1} parent=1 // pred_fallthru
      _
    // Predicated region
    $region10: #{simple_nn_forward.1} parent=1 // pred_check
      _
    $region11: #{simple_nn_forward.1} parent=1 // pred_check_branch
      %31 = sbr.rel (0) target = $region13
    $region12: #{simple_nn_forward.1} parent=1 // pred_region
      _
    $region13: #{simple_nn_forward.1} parent=1 // pred_fallthru
      _
    // Predicated region
    $region14: #{simple_nn_forward.1} parent=1 // pred_check
      _
    $region15: #{simple_nn_forward.1} parent=1 // pred_check_branch
      %33 = sbr.rel (0) target = $region17
    $region16: #{simple_nn_forward.1} parent=1 // pred_region
      %35 = vsyncadd [#allocation6], 0
      %s36 = sshll.u32 %s3, 4
      %s37 = int_to_ptr.hbm [resolvable:$true] %s36
      %s38 = sshll.u32 [#allocation5], 4
      %s39 = int_to_ptr.vmem [resolvable:$true] %s38
      %44 = dma.hbm_to_vmem [thread:$0]  %s37, 2048, %s39, [#allocation6], 128, 128, 8
    $region17: #{simple_nn_forward.1} parent=1 // pred_fallthru
      _
    // Predicated region
    $region18: #{simple_nn_forward.1} parent=1 // pred_check
      _
    $region19: #{simple_nn_forward.1} parent=1 // pred_check_branch
      %46 = sbr.rel (0) target = $region21
    $region20: #{simple_nn_forward.1} parent=1 // pred_region
      _
    $region21: #{simple_nn_forward.1} parent=1 // pred_fallthru
      _
    // Predicated region
    $region22: #{simple_nn_forward.1} parent=1 // pred_check
      _
    $region23: #{simple_nn_forward.1} parent=1 // pred_check_branch
      %48 = sbr.rel (0) target = $region25
    $region24: #{simple_nn_forward.1} parent=1 // pred_region
      %50 = vsyncadd [#allocation6], 0
      %s51 = sshll.u32 %s5, 4
      %s52 = int_to_ptr.hbm [resolvable:$true] %s51
      %s53 = sshll.u32 [#allocation7], 4
      %s54 = int_to_ptr.vmem [resolvable:$true] %s53
      %59 = dma.hbm_to_vmem [thread:$0]  %s52, 2048, %s54, [#allocation6], 128, 128, 8
    $region25: #{simple_nn_forward.1} parent=1 // pred_fallthru
      _
    // Predicated region
    $region26: #{simple_nn_forward.1} parent=1 // pred_check
      _
    $region27: #{simple_nn_forward.1} parent=1 // pred_check_branch
      %61 = sbr.rel (0) target = $region29
    $region28: #{simple_nn_forward.1} parent=1 // pred_region
      _
    $region29: #{simple_nn_forward.1} parent=1 // pred_fallthru
      _
    // Predicated region
    $region30: #{simple_nn_forward.1} parent=1 // pred_check
      _
    $region31: #{simple_nn_forward.1} parent=1 // pred_check_branch
      %63 = sbr.rel (0) target = $region33
    $region32: #{simple_nn_forward.1} parent=1 // pred_region
      %65 = dma.done [#allocation3], 2048
    $region33: #{simple_nn_forward.1} parent=1 // pred_fallthru
      _
    // Predicated region
    $region34: #{simple_nn_forward.1} parent=1 // pred_check
      _
    $region35: #{simple_nn_forward.1} parent=1 // pred_check_branch
      %67 = sbr.rel (0) target = $region37
    $region36: #{simple_nn_forward.1} parent=1 // pred_region
      %69 = dma.done [#allocation6], 2048
    $region37: #{simple_nn_forward.1} parent=1 // pred_fallthru
      _
    // Predicated region
    $region38: #{simple_nn_forward.1} parent=1 // pred_check
      _
    $region39: #{simple_nn_forward.1} parent=1 // pred_check_branch
      %71 = sbr.rel (0) target = $region41
    $region40: #{simple_nn_forward.1} parent=1 // pred_region
      %73 = dma.done [#allocation6], 2048
    $region41: #{simple_nn_forward.1} parent=1 // pred_fallthru
      _
    %v74 = vld [vmem:[%s0] sm:$0xff]
    %v75 = vld [vmem:[#allocation2] sm:$0xff]
    %v76 = vld [vmem:[#allocation2 + $0x8] sm:$0xff]
    %v77 = vld [vmem:[#allocation2 + $0x10] sm:$0xff]
    %v78 = vld [vmem:[#allocation2 + $0x18] sm:$0xff]
    %v79 = vld [vmem:[#allocation2 + $0x20] sm:$0xff]
    %v80 = vld [vmem:[#allocation2 + $0x28] sm:$0xff]
    %v81 = vld [vmem:[#allocation2 + $0x30] sm:$0xff]
    %v82 = vld [vmem:[#allocation2 + $0x38] sm:$0xff]
    %v83 = vld [vmem:[#allocation2 + $0x40] sm:$0xff]
    %v84 = vld [vmem:[#allocation2 + $0x48] sm:$0xff]
    %v85 = vld [vmem:[#allocation2 + $0x50] sm:$0xff]
    %v86 = vld [vmem:[#allocation2 + $0x58] sm:$0xff]
    %v87 = vld [vmem:[#allocation2 + $0x60] sm:$0xff]
    %v88 = vld [vmem:[#allocation2 + $0x68] sm:$0xff]
    %v89 = vld [vmem:[#allocation2 + $0x70] sm:$0xff]
    %v90 = vld [vmem:[#allocation2 + $0x78] sm:$0xff]
    %v91 = vld [vmem:[%s2] sm:$0x1]
    %v93 = vperm.slane %v91, 0
    %95 = vmatpush.msra.mxu0 %v90
    %96 = vmatpush.msra.mxu0 %v89
    %97 = vmatpush.msra.mxu0 %v88
    %98 = vmatpush.msra.mxu0 %v87
    %99 = vmatpush.msra.mxu0 %v86
    %100 = vmatpush.msra.mxu0 %v85
    %101 = vmatpush.msra.mxu0 %v84
    %102 = vmatpush.msra.mxu0 %v83
    %103 = vmatpush.msra.mxu0 %v82
    %104 = vmatpush.msra.mxu0 %v81
    %105 = vmatpush.msra.mxu0 %v80
    %106 = vmatpush.msra.mxu0 %v79
    %107 = vmatpush.msra.mxu0 %v78
    %108 = vmatpush.msra.mxu0 %v77
    %109 = vmatpush.msra.mxu0 %v76
    %110 = vmatpush.msra.mxu0 %v75
    %111 = vmatmul.f32.gmra.mxu0 %v74
    %v112 = vpop.f32.mrf.mxu0
    %v113 = vadd.f32 %v93, %v112
    %114 = vdwg.mxu0
    %v115 = vmax.f32 %v113, 0.0
    %v116 = vld [vmem:[#allocation5] sm:$0xff]
    %v117 = vld [vmem:[#allocation5 + $0x8] sm:$0xff]
    %v118 = vld [vmem:[#allocation5 + $0x10] sm:$0xff]
    %v119 = vld [vmem:[#allocation5 + $0x18] sm:$0xff]
    %v120 = vld [vmem:[#allocation5 + $0x20] sm:$0xff]
    %v121 = vld [vmem:[#allocation5 + $0x28] sm:$0xff]
    %v122 = vld [vmem:[#allocation5 + $0x30] sm:$0xff]
    %v123 = vld [vmem:[#allocation5 + $0x38] sm:$0xff]
    %v124 = vld [vmem:[#allocation5 + $0x40] sm:$0xff]
    %v125 = vld [vmem:[#allocation5 + $0x48] sm:$0xff]
    %v126 = vld [vmem:[#allocation5 + $0x50] sm:$0xff]
    %v127 = vld [vmem:[#allocation5 + $0x58] sm:$0xff]
    %v128 = vld [vmem:[#allocation5 + $0x60] sm:$0xff]
    %v129 = vld [vmem:[#allocation5 + $0x68] sm:$0xff]
    %v130 = vld [vmem:[#allocation5 + $0x70] sm:$0xff]
    %v131 = vld [vmem:[#allocation5 + $0x78] sm:$0xff]
    %v132 = vld [vmem:[%s4] sm:$0x1]
    %v134 = vperm.slane %v132, 0
    %136 = vmatpush.msra.mxu0 %v131
    %137 = vmatpush.msra.mxu0 %v130
    %138 = vmatpush.msra.mxu0 %v129
    %139 = vmatpush.msra.mxu0 %v128
    %140 = vmatpush.msra.mxu0 %v127
    %141 = vmatpush.msra.mxu0 %v126
    %142 = vmatpush.msra.mxu0 %v125
    %143 = vmatpush.msra.mxu0 %v124
    %144 = vmatpush.msra.mxu0 %v123
    %145 = vmatpush.msra.mxu0 %v122
    %146 = vmatpush.msra.mxu0 %v121
    %147 = vmatpush.msra.mxu0 %v120
    %148 = vmatpush.msra.mxu0 %v119
    %149 = vmatpush.msra.mxu0 %v118
    %150 = vmatpush.msra.mxu0 %v117
    %151 = vmatpush.msra.mxu0 %v116
    %152 = vmatmul.f32.gmra.mxu0 %v115
    %v153 = vpop.f32.mrf.mxu0
    %v154 = vadd.f32 %v134, %v153
    %155 = vdwg.mxu0
    %v156 = vmax.f32 %v154, 0.0
    %v157 = vld [vmem:[#allocation7] sm:$0xff]
    %v158 = vld [vmem:[#allocation7 + $0x8] sm:$0xff]
    %v159 = vld [vmem:[#allocation7 + $0x10] sm:$0xff]
    %v160 = vld [vmem:[#allocation7 + $0x18] sm:$0xff]
    %v161 = vld [vmem:[#allocation7 + $0x20] sm:$0xff]
    %v162 = vld [vmem:[#allocation7 + $0x28] sm:$0xff]
    %v163 = vld [vmem:[#allocation7 + $0x30] sm:$0xff]
    %v164 = vld [vmem:[#allocation7 + $0x38] sm:$0xff]
    %v165 = vld [vmem:[#allocation7 + $0x40] sm:$0xff]
    %v166 = vld [vmem:[#allocation7 + $0x48] sm:$0xff]
    %v167 = vld [vmem:[#allocation7 + $0x50] sm:$0xff]
    %v168 = vld [vmem:[#allocation7 + $0x58] sm:$0xff]
    %v169 = vld [vmem:[#allocation7 + $0x60] sm:$0xff]
    %v170 = vld [vmem:[#allocation7 + $0x68] sm:$0xff]
    %v171 = vld [vmem:[#allocation7 + $0x70] sm:$0xff]
    %v172 = vld [vmem:[#allocation7 + $0x78] sm:$0xff]
    %v173 = vld [vmem:[%s6] sm:$0x1]
    %v175 = vperm.slane %v173, 0
    %177 = vmatpush.msra.mxu0 %v172
    %178 = vmatpush.msra.mxu0 %v171
    %179 = vmatpush.msra.mxu0 %v170
    %180 = vmatpush.msra.mxu0 %v169
    %181 = vmatpush.msra.mxu0 %v168
    %182 = vmatpush.msra.mxu0 %v167
    %183 = vmatpush.msra.mxu0 %v166
    %184 = vmatpush.msra.mxu0 %v165
    %185 = vmatpush.msra.mxu0 %v164
    %186 = vmatpush.msra.mxu0 %v163
    %187 = vmatpush.msra.mxu0 %v162
    %188 = vmatpush.msra.mxu0 %v161
    %189 = vmatpush.msra.mxu0 %v160
    %190 = vmatpush.msra.mxu0 %v159
    %191 = vmatpush.msra.mxu0 %v158
    %192 = vmatpush.msra.mxu0 %v157
    %193 = vmatmul.f32.gmra.mxu0 %v156
    %v194 = vpop.f32.mrf.mxu0
    %v195 = vadd.f32 %v175, %v194
    %196 = vdwg.mxu0
    %197 = vmax.xlane.f32.xlu0 %v195
    %v198 = vpop.xlane.xlu0 %197
    %v199 = vsub.f32 %v195, %v198
    %v200 = vmul.f32 %v199, 1.442695
    %v201 = vpow.pop %v200
    %202 = vadd.xlane.f32.xlu0 %v201
    %v203 = vpop.xlane.xlu0 %202
    %v204 = vlog2.pop %v203
    %v205 = vmul.f32 %v204, 0.6931472
    %v206 = vsub.f32 %v199, %v205
    %207 = vst [vmem:[#allocation8] sm:$0xff] %v206
    // Predicated region
    $region42: #{simple_nn_forward.1} parent=1 // pred_check
      _
    $region43: #{simple_nn_forward.1} parent=1 // pred_check_branch
      %209 = sbr.rel (0) target = $region45
    $region44: #{simple_nn_forward.1} parent=1 // pred_region
      %211 = vsyncadd [#allocation4], 0
      %s213 = sshll.u32 [#allocation8], 4
      %s214 = int_to_ptr.vmem [resolvable:$true] %s213
      %s215 = sshll.u32 %s7, 4
      %s216 = int_to_ptr.hbm [resolvable:$true] %s215
      %218 = dma.vmem_to_hbm [thread:$0]  %s214, 128, %s216, [#allocation4]
    $region45: #{simple_nn_forward.1} parent=1 // pred_fallthru
      _
    // Predicated region
    $region46: #{simple_nn_forward.1} parent=1 // pred_check
      _
    $region47: #{simple_nn_forward.1} parent=1 // pred_check_branch
      %220 = sbr.rel (0) target = $region49
    $region48: #{simple_nn_forward.1} parent=1 // pred_region
      %222 = dma.done [#allocation4], 128
    $region49: #{simple_nn_forward.1} parent=1 // pred_fallthru
      _
    %223 = vsyncpa [#allocation3], 1
    %224 = vsyncpa [#allocation6], 1
    %225 = vsyncpa [#allocation4], 1

</llo_original>
